<compile_context>
chip_gen: v7x
topology: tpu7x:2x2x1
jax: 0.10.0
libtpu: 0.0.40
codegen_flags: <defaults>
</compile_context>

<pallas_src>
import functools

import jax
import jax.numpy as jnp
from jax.experimental import pallas as pl
from jax.experimental.pallas import tpu as pltpu

LANE = 128           # vreg lane width
SUB = 8              # f32 vreg sublane count
MAX_ROW_TILE = 4096  # (4096, 128) f32 = 2 MiB per input block; 2 inputs x 2 bufs = 8 MiB
MAX_SPLITS = 2       # leading "parallel" axis -> both TensorCores on v7x


def _combined_loss_kernel(p_ref, t_ref, o_sq_ref, o_ab_ref, *,
                          row_tile, tiles_per_split, rows, need_mask):
    i = pl.program_id(0)  # "parallel" split axis
    k = pl.program_id(1)  # "arbitrary" reduction axis

    @pl.when(k == 0)
    def _():
        o_sq_ref[...] = jnp.zeros_like(o_sq_ref)
        o_ab_ref[...] = jnp.zeros_like(o_ab_ref)

    d = p_ref[...].astype(jnp.float32) - t_ref[...].astype(jnp.float32)

    def accumulate(dd):
        # Fold the (row_tile, 128) tile onto one (8, 128) vreg-shaped accumulator with
        # elementwise VPU adds; the single cross-lane reduce happens in the wrapper.
        o_sq_ref[...] += (dd * dd).reshape(row_tile // SUB, SUB, LANE).sum(axis=0)
        o_ab_ref[...] += jnp.abs(dd).reshape(row_tile // SUB, SUB, LANE).sum(axis=0)

    if need_mask:
        # Only the last real (partial) tile and the clamped duplicate tiles of the
        # last split need masking; interior tiles take the mask-free path.
        tile_idx = i * tiles_per_split + k          # un-clamped global tile index
        tile_end = (tile_idx + 1) * row_tile

        @pl.when(tile_end <= rows)
        def _():
            accumulate(d)

        @pl.when(tile_end > rows)
        def _():
            row0 = tile_idx * row_tile
            row_ids = row0 + jax.lax.broadcasted_iota(jnp.int32, (row_tile, LANE), 0)
            accumulate(jnp.where(row_ids < rows, d, 0.0))
    else:
        accumulate(d)


def combined_loss(predicted, target, weight_first=0.5):
    """weight_first * MSE(predicted, target) + (1 - weight_first) * L1(predicted, target)."""
    assert predicted.shape == target.shape
    n_elems = predicted.size
    if n_elems == 0:
        # torch's mean-reduction losses return NaN on empty inputs.
        return jnp.float32(jnp.nan)

    p_flat = predicted.reshape(-1)
    t_flat = target.reshape(-1)

    # Lane-dense (rows, 128) view.  For typical diffusion tensors n % 128 == 0, so the
    # reshape is free and no data is copied.  Only if n % 128 != 0 do we pad <= 127
    # zeros (they contribute exactly 0 to both sums); that fallback costs one extra
    # copy of each input but is rare for image-shaped tensors.
    pad = (-n_elems) % LANE
    if pad:
        p_flat = jnp.pad(p_flat, (0, pad))
        t_flat = jnp.pad(t_flat, (0, pad))
    rows = (n_elems + pad) // LANE
    p2 = p_flat.reshape(rows, LANE)
    t2 = t_flat.reshape(rows, LANE)

    # Sublane packing multiple: 8 rows (32-bit), 16 (bf16/fp16), 32 (int8/fp8) so the
    # DMA'd blocks stay native-layout for any input dtype.
    itemsize = jnp.dtype(predicted.dtype).itemsize
    sub_mult = SUB * max(1, 4 // max(1, itemsize))

    # Big blocks amortize the ~0.35us per-step pipeline overhead, but cap near rows/2
    # so num_tiles >= 2 whenever possible and the leading "parallel" axis really feeds
    # both v7x TensorCores (neutral on single-TC v5e/v6e).
    half_rows = (rows // 2) // sub_mult * sub_mult
    row_tile = min(MAX_ROW_TILE, max(sub_mult, half_rows))
    num_tiles = pl.cdiv(rows, row_tile)
    num_splits = min(MAX_SPLITS, num_tiles)
    tiles_per_split = pl.cdiv(num_tiles, num_splits)
    need_mask = (num_splits * tiles_per_split * row_tile) != rows

    def in_map(i, k):
        # Clamp so the auto-generated DMA never addresses past the last real tile;
        # the kernel masks the (fully out-of-range) duplicate contribution instead.
        return (jnp.minimum(i * tiles_per_split + k, num_tiles - 1), 0)

    out_map = lambda i, k: (i, 0)

    kernel = functools.partial(
        _combined_loss_kernel,
        row_tile=row_tile,
        tiles_per_split=tiles_per_split,
        rows=rows,
        need_mask=need_mask,
    )

    sq_part, ab_part = pl.pallas_call(
        kernel,
        out_shape=(
            jax.ShapeDtypeStruct((num_splits * SUB, LANE), jnp.float32),
            jax.ShapeDtypeStruct((num_splits * SUB, LANE), jnp.float32),
        ),
        grid_spec=pltpu.PrefetchScalarGridSpec(
            num_scalar_prefetch=0,
            grid=(num_splits, tiles_per_split),
            in_specs=[
                pl.BlockSpec((row_tile, LANE), in_map),
                pl.BlockSpec((row_tile, LANE), in_map),
            ],
            out_specs=[
                pl.BlockSpec((SUB, LANE), out_map),
                pl.BlockSpec((SUB, LANE), out_map),
            ],
        ),
        compiler_params=pltpu.CompilerParams(
            dimension_semantics=("parallel", "arbitrary"),
        ),
    )(p2, t2)

    # Tiny epilogue: final cross-lane reduce, means and weighted combination.
    inv_n = jnp.float32(1.0 / n_elems)
    mse = jnp.sum(sq_part) * inv_n
    mae = jnp.sum(ab_part) * inv_n
    w = jnp.float32(weight_first)
    return w * mse + (jnp.float32(1.0) - w) * mae


def _reference(predicted, target, weight_first=0.5):
    d = predicted.astype(jnp.float32) - target.astype(jnp.float32)
    mse = jnp.mean(d * d)
    mae = jnp.mean(jnp.abs(d))
    return weight_first * mse + (1.0 - weight_first) * mae


if __name__ == "__main__":
    key = jax.random.PRNGKey(0)

    # NCHW, like the diffusion model's predicted-noise / target-noise tensors.
    cases = [
        ((2, 4, 16, 16), 0.5),   # 2048 elems: clean (rows=16), 2-way split, no mask
        ((2, 3, 16, 16), 0.7),   # 1536 elems: rows=12, partial last tile -> masked path
        ((4, 4, 32, 32), 0.25),  # 16384 elems: rows=128, row_tile=64, both splits busy
    ]

    ok = True
    for shape, w in cases:
        key, k1, k2 = jax.random.split(key, 3)
        predicted = jax.random.normal(k1, shape, dtype=jnp.float32)
        target = jax.random.normal(k2, shape, dtype=jnp.float32)

        loss = combined_loss(predicted, target, weight_first=w)
        jax.block_until_ready(loss)

        ref = _reference(predicted, target, weight_first=w)
        if not jnp.allclose(loss, ref, rtol=1e-5, atol=1e-5):
            ok = False
            print("MISMATCH", shape, float(loss), float(ref))

    assert ok
    print("KERNEL_OK")
</pallas_src>

<mosaic_0001>
module attributes {stable_mosaic.version = 11 : i64} {
  func.func @_combined_loss_kernel(%arg0: i32, %arg1: i32, %arg2: memref<8x128xf32, #tpu.memory_space<vmem>>, %arg3: memref<8x128xf32, #tpu.memory_space<vmem>>, %arg4: memref<8x128xf32, #tpu.memory_space<vmem>>, %arg5: memref<8x128xf32, #tpu.memory_space<vmem>>) attributes {dimension_semantics = [#tpu.dimension_semantics<parallel>, #tpu.dimension_semantics<arbitrary>], iteration_bounds = array<i64: 2, 1>, scalar_prefetch = 0 : i64, scratch_operands = 0 : i64, tpu.core_type = #tpu.core_type<tc>, window_params = [{transform_indices = @transform_0, window_bounds = array<i64: 8, 128>}, {transform_indices = @transform_1, window_bounds = array<i64: 8, 128>}, {transform_indices = @transform_2, window_bounds = array<i64: 8, 128>}, {transform_indices = @transform_3, window_bounds = array<i64: 8, 128>}]} {
    %c0_i32 = arith.constant 0 : i32
    %0 = arith.cmpi eq, %arg1, %c0_i32 : i32
    %1 = arith.extui %0 : i1 to i32
    %c0_i32_0 = arith.constant 0 : i32
    %2 = arith.cmpi ne, %1, %c0_i32_0 : i32
    scf.if %2 {
      %cst_13 = arith.constant 0.000000e+00 : f32
      %18 = vector.broadcast %cst_13 : f32 to vector<8x128xf32>
      %c0_14 = arith.constant 0 : index
      %c0_15 = arith.constant 0 : index
      %19 = vector.load %arg4[%c0_14, %c0_15] : memref<8x128xf32, #tpu.memory_space<vmem>>, vector<8x128xf32>
      tpu.vector_store %arg4[%c0_14, %c0_15], %18 {strides = array<i32>} : memref<8x128xf32, #tpu.memory_space<vmem>>, vector<8x128xf32>,
      %cst_16 = arith.constant 0.000000e+00 : f32
      %20 = vector.broadcast %cst_16 : f32 to vector<8x128xf32>
      %c0_17 = arith.constant 0 : index
      %c0_18 = arith.constant 0 : index
      %21 = vector.load %arg5[%c0_17, %c0_18] : memref<8x128xf32, #tpu.memory_space<vmem>>, vector<8x128xf32>
      tpu.vector_store %arg5[%c0_17, %c0_18], %20 {strides = array<i32>} : memref<8x128xf32, #tpu.memory_space<vmem>>, vector<8x128xf32>,
    } else {
    }
    %c0 = arith.constant 0 : index
    %c0_1 = arith.constant 0 : index
    %3 = vector.load %arg2[%c0, %c0_1] : memref<8x128xf32, #tpu.memory_space<vmem>>, vector<8x128xf32>
    %c0_2 = arith.constant 0 : index
    %c0_3 = arith.constant 0 : index
    %4 = vector.load %arg3[%c0_2, %c0_3] : memref<8x128xf32, #tpu.memory_space<vmem>>, vector<8x128xf32>
    %5 = arith.subf %3, %4 : vector<8x128xf32>
    %c0_4 = arith.constant 0 : index
    %c0_5 = arith.constant 0 : index
    %6 = vector.load %arg4[%c0_4, %c0_5] : memref<8x128xf32, #tpu.memory_space<vmem>>, vector<8x128xf32>
    %7 = arith.mulf %5, %5 : vector<8x128xf32>
    %8 = vector.shape_cast %7 : vector<8x128xf32> to vector<1x8x128xf32>
    %cst = arith.constant dense<0.000000e+00> : vector<8x128xf32>
    %9 = vector.multi_reduction <add>, %8, %cst [0] : vector<1x8x128xf32> to vector<8x128xf32>
    %10 = arith.addf %6, %9 : vector<8x128xf32>
    %c0_6 = arith.constant 0 : index
    %c0_7 = arith.constant 0 : index
    %11 = vector.load %arg4[%c0_6, %c0_7] : memref<8x128xf32, #tpu.memory_space<vmem>>, vector<8x128xf32>
    tpu.vector_store %arg4[%c0_6, %c0_7], %10 {strides = array<i32>} : memref<8x128xf32, #tpu.memory_space<vmem>>, vector<8x128xf32>,
    %c0_8 = arith.constant 0 : index
    %c0_9 = arith.constant 0 : index
    %12 = vector.load %arg5[%c0_8, %c0_9] : memref<8x128xf32, #tpu.memory_space<vmem>>, vector<8x128xf32>
    %13 = math.absf %5 : vector<8x128xf32>
    %14 = vector.shape_cast %13 : vector<8x128xf32> to vector<1x8x128xf32>
    %cst_10 = arith.constant dense<0.000000e+00> : vector<8x128xf32>
    %15 = vector.multi_reduction <add>, %14, %cst_10 [0] : vector<1x8x128xf32> to vector<8x128xf32>
    %16 = arith.addf %12, %15 : vector<8x128xf32>
    %c0_11 = arith.constant 0 : index
    %c0_12 = arith.constant 0 : index
    %17 = vector.load %arg5[%c0_11, %c0_12] : memref<8x128xf32, #tpu.memory_space<vmem>>, vector<8x128xf32>
    tpu.vector_store %arg5[%c0_11, %c0_12], %16 {strides = array<i32>} : memref<8x128xf32, #tpu.memory_space<vmem>>, vector<8x128xf32>,
    return
  }
  func.func @transform_0(%arg0: i32, %arg1: i32) -> (i32, i32) {
    %c1_i32 = arith.constant 1 : i32
    %0 = arith.muli %arg0, %c1_i32 : i32
    %1 = arith.addi %0, %arg1 : i32
    %c1_i32_0 = arith.constant 1 : i32
    %2 = arith.minsi %1, %c1_i32_0 : i32
    %c0_i32 = arith.constant 0 : i32
    %c0_i32_1 = arith.constant 0 : i32
    return %2, %c0_i32 : i32, i32
  }
  func.func @transform_1(%arg0: i32, %arg1: i32) -> (i32, i32) {
    %c1_i32 = arith.constant 1 : i32
    %0 = arith.muli %arg0, %c1_i32 : i32
    %1 = arith.addi %0, %arg1 : i32
    %c1_i32_0 = arith.constant 1 : i32
    %2 = arith.minsi %1, %c1_i32_0 : i32
    %c0_i32 = arith.constant 0 : i32
    %c0_i32_1 = arith.constant 0 : i32
    return %2, %c0_i32 : i32, i32
  }
  func.func @transform_2(%arg0: i32, %arg1: i32) -> (i32, i32) {
    %c0_i32 = arith.constant 0 : i32
    %c0_i32_0 = arith.constant 0 : i32
    return %arg0, %c0_i32 : i32, i32
  }
  func.func @transform_3(%arg0: i32, %arg1: i32) -> (i32, i32) {
    %c0_i32 = arith.constant 0 : i32
    %c0_i32_0 = arith.constant 0 : i32
    return %arg0, %c0_i32 : i32, i32
  }
}

</mosaic_0001>

<llo_original>
// kernel: tpu_custom_call.1
$region0: #{tpu_custom_call.1}
  #allocation0 [shape = 'u32[]', space=smem, size = 0x4, offset = 0x4, fixed_abs, tag = 'smem constant byte address 0x4 - core index']
  #allocation1 [shape = 'u32[144,128]{1,0:T(1,128)}', space=vmem, size = 0x12000, scoped, tag = 'internal scratch']
  %s0 = inlined_call_operand.hbm [shape: f32[16,128], index: 0, kind: input, shape index: {}]
  %s1 = inlined_call_operand.hbm [shape: f32[16,128], index: 1, kind: input, shape index: {}]
  %s2 = inlined_call_operand.hbm [shape: f32[16,128], index: 2, kind: output, shape index: {0}]
  %s3 = inlined_call_operand.hbm [shape: f32[16,128], index: 3, kind: output, shape index: {1}]
  %4 = xla_tuple %s2, %s3
  %s5 = sld [smem:[#allocation0]]
  $region61: #{tpu_custom_call.1} parent=0
    _
  %s7 = ssub.s32 1, %s5
  %s8 = scalar_select 0, %s7, %s5
  $region1: #{tpu_custom_call.1} parent=0
    #allocation2 [shape = 'u8[8192]{0}', space=vmem, size = 0x2000, scoped, tag = 'input window, operand 0']
    #allocation3 [shape = 's32[2]{0}', space=sflag, size = 0x8, scoped, tag = 'scoped memory for tpu_custom_call.1']
    #allocation4 [shape = 's32[2]{0}', space=sflag, size = 0x8, scoped, tag = 'scoped memory for tpu_custom_call.1']
    #allocation5 [shape = 'u8[8192]{0}', space=vmem, size = 0x2000, scoped, tag = 'input window, operand 1']
    #allocation6 [shape = 's32[2]{0}', space=sflag, size = 0x8, scoped, tag = 'scoped memory for tpu_custom_call.1']
    #allocation7 [shape = 'u8[8192]{0}', space=vmem, size = 0x2000, scoped, tag = 'output window, operand 0']
    #allocation8 [shape = 'u8[8192]{0}', space=vmem, size = 0x2000, scoped, tag = 'output window, operand 1']
    #allocation9 [shape = 's32[2]{0}', space=sflag, size = 0x8, scoped, tag = 'scoped memory for tpu_custom_call.1']
    %9 = vsyncpa [#allocation3], 0
    %s10 = scalar_lea.sflag [#allocation3], 1
    %11 = vsyncpa %s10, 0
    %12 = vsyncpa [#allocation6], 0
    %s13 = scalar_lea.sflag [#allocation6], 1
    %14 = vsyncpa %s13, 0
    %15 = vsyncpa [#allocation4], 0
    %s16 = scalar_lea.sflag [#allocation4], 1
    %17 = vsyncpa %s16, 0
    %18 = vsyncpa [#allocation9], 0
    %s19 = scalar_lea.sflag [#allocation9], 1
    %20 = vsyncpa %s19, 0
    loop: start=0, step=1, limit=4
    $region2: #{tpu_custom_call.1} parent=1 // loop_pre_header
      _
    $region3: #{tpu_custom_call.1} parent=1 // loop_header
      %s22 = sphi 0, %s26
      %p23 = scmp.ge.s32.totalorder %s22, 4
      %s29 = sphi 0, %s41
      %s30 = sphi 0, %s37
      %s31 = sphi 0, %s29
      %s32 = sphi 0, %s30
      %s33 = sphi 0, %s31
      %s34 = sphi 0, %s32
      %s50 = sphi 0, %s52
      %s53 = sphi 0, %s50
      %s54 = sphi 0, %s53
      %s70 = sphi 0, %s54
      %s82 = sphi 0, %s84
      %s85 = sphi 0, %s82
      %s86 = sphi 0, %s85
      %s102 = sphi 0, %s86
      %s108 = sphi 0, %s110
      %s111 = sphi 0, %s108
      %s112 = sphi 0, %s111
      %s128 = sphi 0, %s112
      %s134 = sphi 0, %s136
      %s137 = sphi 0, %s134
      %s138 = sphi 0, %s137
      %s154 = sphi 0, %s138
    $region4: #{tpu_custom_call.1} parent=1 // loop_header_branch
      %25 = sbr.rel (%p23) target = $region8
    $region5: #{tpu_custom_call.1} parent=1 // loop_body
      %s27 = ssub.s32 %s22, 1
      %s28 = ssub.s32 %s22, 2
      %s35 = sadd.s32 1, %s30
      %p36 = scmp.ge.s32.totalorder %s35, 1
      %s37 = scalar_select %p36, 0, %s35
      %s38 = sadd.s32 1, %s29
      %s39 = scalar_select %p36, %s38, %s29
      %p40 = scmp.ge.s32.totalorder %s39, 2
      %s41 = scalar_select %p40, 0, %s39
      %s42 = sadd.s32 %s29, %s30
      %p43 = scmp.lt.s32.totalorder %s42, 1
      %s44 = scalar_select %p43, %s42, 1
      %s45 = sadd.s32 %s41, %s37
      %p46 = scmp.lt.s32.totalorder %s45, 1
      %s47 = scalar_select %p46, %s45, 1
      %s48 = ssub.s32 %s44, %s47
      %p49 = scmp.eq.s32.totalorder %s48, 0
      %s51 = sadd.s32 %s50, 1
      %s52 = scalar_select %p49, %s50, %s51
      %p55 = pneg %p49
      %p56 = scmp.eq.s32.totalorder %s22, 1
      %p57 = por %p55, %p56
      %p58 = scmp.ne.s32.totalorder %s50, %s53
      %p59 = scmp.eq.s32.totalorder %s22, 0
      %p60 = por %p58, %p59
      %p61 = scmp.ne.s32.totalorder %s50, %s53
      %p62 = scmp.eq.s32.totalorder %s27, 1
      %p63 = por %p61, %p62
      %p64 = scmp.ne.s32.totalorder %s53, %s54
      %p65 = scmp.eq.s32.totalorder %s27, 0
      %p66 = por %p64, %p65
      %p67 = scmp.ne.s32.totalorder %s53, %s54
      %p68 = scmp.eq.s32.totalorder %s28, 1
      %p69 = por %p67, %p68
      %p71 = scmp.ne.s32.totalorder %s54, %s70
      %p72 = scmp.eq.s32.totalorder %s28, 0
      %p73 = por %p71, %p72
      %s74 = sadd.s32 %s29, %s30
      %p75 = scmp.lt.s32.totalorder %s74, 1
      %s76 = scalar_select %p75, %s74, 1
      %s77 = sadd.s32 %s41, %s37
      %p78 = scmp.lt.s32.totalorder %s77, 1
      %s79 = scalar_select %p78, %s77, 1
      %s80 = ssub.s32 %s76, %s79
      %p81 = scmp.eq.s32.totalorder %s80, 0
      %s83 = sadd.s32 %s82, 1
      %s84 = scalar_select %p81, %s82, %s83
      %p87 = pneg %p81
      %p88 = scmp.eq.s32.totalorder %s22, 1
      %p89 = por %p87, %p88
      %p90 = scmp.ne.s32.totalorder %s82, %s85
      %p91 = scmp.eq.s32.totalorder %s22, 0
      %p92 = por %p90, %p91
      %p93 = scmp.ne.s32.totalorder %s82, %s85
      %p94 = scmp.eq.s32.totalorder %s27, 1
      %p95 = por %p93, %p94
      %p96 = scmp.ne.s32.totalorder %s85, %s86
      %p97 = scmp.eq.s32.totalorder %s27, 0
      %p98 = por %p96, %p97
      %p99 = scmp.ne.s32.totalorder %s85, %s86
      %p100 = scmp.eq.s32.totalorder %s28, 1
      %p101 = por %p99, %p100
      %p103 = scmp.ne.s32.totalorder %s86, %s102
      %p104 = scmp.eq.s32.totalorder %s28, 0
      %p105 = por %p103, %p104
      %s106 = ssub.s32 %s29, %s41
      %p107 = scmp.eq.s32.totalorder %s106, 0
      %s109 = sadd.s32 %s108, 1
      %s110 = scalar_select %p107, %s108, %s109
      %p113 = pneg %p107
      %p114 = scmp.eq.s32.totalorder %s22, 1
      %p115 = por %p113, %p114
      %p116 = scmp.ne.s32.totalorder %s108, %s111
      %p117 = scmp.eq.s32.totalorder %s22, 0
      %p118 = por %p116, %p117
      %p119 = scmp.ne.s32.totalorder %s108, %s111
      %p120 = scmp.eq.s32.totalorder %s27, 1
      %p121 = por %p119, %p120
      %p122 = scmp.ne.s32.totalorder %s111, %s112
      %p123 = scmp.eq.s32.totalorder %s27, 0
      %p124 = por %p122, %p123
      %p125 = scmp.ne.s32.totalorder %s111, %s112
      %p126 = scmp.eq.s32.totalorder %s28, 1
      %p127 = por %p125, %p126
      %p129 = scmp.ne.s32.totalorder %s112, %s128
      %p130 = scmp.eq.s32.totalorder %s28, 0
      %p131 = por %p129, %p130
      %s132 = ssub.s32 %s29, %s41
      %p133 = scmp.eq.s32.totalorder %s132, 0
      %s135 = sadd.s32 %s134, 1
      %s136 = scalar_select %p133, %s134, %s135
      %p139 = pneg %p133
      %p140 = scmp.eq.s32.totalorder %s22, 1
      %p141 = por %p139, %p140
      %p142 = scmp.ne.s32.totalorder %s134, %s137
      %p143 = scmp.eq.s32.totalorder %s22, 0
      %p144 = por %p142, %p143
      %p145 = scmp.ne.s32.totalorder %s134, %s137
      %p146 = scmp.eq.s32.totalorder %s27, 1
      %p147 = por %p145, %p146
      %p148 = scmp.ne.s32.totalorder %s137, %s138
      %p149 = scmp.eq.s32.totalorder %s27, 0
      %p150 = por %p148, %p149
      %p151 = scmp.ne.s32.totalorder %s137, %s138
      %p152 = scmp.eq.s32.totalorder %s28, 1
      %p153 = por %p151, %p152
      %p155 = scmp.ne.s32.totalorder %s138, %s154
      %p156 = scmp.eq.s32.totalorder %s28, 0
      %p157 = por %p155, %p156
      %p158 = scmp.le.s32.totalorder 1, %s22
      %p159 = scmp.lt.s32.totalorder %s22, 3
      %p160 = pnand %p158, %p159
      %p161 = pneg %p160
      // Predicated region
      $region9: #{tpu_custom_call.1} parent=5 // pred_check
        _
      $region10: #{tpu_custom_call.1} parent=5 // pred_check_branch
        %163 = sbr.rel (%p160) target = $region12
      $region11: #{tpu_custom_call.1} parent=5 // pred_region
        %s164 = ssub.s32 %s22, 1
      $region12: #{tpu_custom_call.1} parent=5 // pred_fallthru
        _
      %p165 = scmp.lt.s32.totalorder %s22, 2
      // Predicated region
      $region13: #{tpu_custom_call.1} parent=5 // pred_check
        %p166 = pneg %p165
      $region14: #{tpu_custom_call.1} parent=5 // pred_check_branch
        %168 = sbr.rel (%p166) target = $region16
      $region15: #{tpu_custom_call.1} parent=5 // pred_region
        // Predicated region
        $region17: #{tpu_custom_call.1} parent=15 // pred_check
          %p169 = pneg %p60
        $region18: #{tpu_custom_call.1} parent=15 // pred_check_branch
          %171 = sbr.rel (%p169) target = $region20
        $region19: #{tpu_custom_call.1} parent=15 // pred_region
          %s172 = sand.u32 %s50, 1
          %s173 = scalar_lea.sflag [#allocation3], %s172
          %s174 = sand.u32 %s50, 1
          %s175 = smul.addr %s174, 8
          %s176 = scalar_lea.vmem [#allocation2], %s175
          %s177 = sadd.s32 %s29, %s30
          %p178 = scmp.lt.s32.totalorder %s177, 1
          %s179 = scalar_select %p178, %s177, 1
          %s181 = ssub.s32 128, 128
          %182 = vsyncadd %s173, %s181
          %s183 = smul.addr %s179, 128
          %s184 = scalar_lea.hbm %s0, %s183
          %s186 = sshll.u32 %s176, 4
          %s187 = int_to_ptr.vmem [resolvable:$true] %s186
          %189 = dma.hbm_to_vmem [thread:$0]  %s184, 128, %s187, %s173
        $region20: #{tpu_custom_call.1} parent=15 // pred_fallthru
          _
        // Predicated region
        $region21: #{tpu_custom_call.1} parent=15 // pred_check
          %p190 = pneg %p92
        $region22: #{tpu_custom_call.1} parent=15 // pred_check_branch
          %192 = sbr.rel (%p190) target = $region24
        $region23: #{tpu_custom_call.1} parent=15 // pred_region
          %s193 = sand.u32 %s82, 1
          %s194 = scalar_lea.sflag [#allocation6], %s193
          %s195 = sand.u32 %s82, 1
          %s196 = smul.addr %s195, 8
          %s197 = scalar_lea.vmem [#allocation5], %s196
          %s198 = sadd.s32 %s29, %s30
          %p199 = scmp.lt.s32.totalorder %s198, 1
          %s200 = scalar_select %p199, %s198, 1
          %s202 = ssub.s32 128, 128
          %203 = vsyncadd %s194, %s202
          %s204 = smul.addr %s200, 128
          %s205 = scalar_lea.hbm %s1, %s204
          %s207 = sshll.u32 %s197, 4
          %s208 = int_to_ptr.vmem [resolvable:$true] %s207
          %210 = dma.hbm_to_vmem [thread:$0]  %s205, 128, %s208, %s194
        $region24: #{tpu_custom_call.1} parent=15 // pred_fallthru
          _
      $region16: #{tpu_custom_call.1} parent=5 // pred_fallthru
        _
      %p211 = scmp.le.s32.totalorder 1, %s22
      %p212 = scmp.lt.s32.totalorder %s22, 3
      %p213 = pnand %p211, %p212
      %p214 = pneg %p213
      // Predicated region
      $region25: #{tpu_custom_call.1} parent=5 // pred_check
        _
      $region26: #{tpu_custom_call.1} parent=5 // pred_check_branch
        %216 = sbr.rel (%p213) target = $region28
      $region27: #{tpu_custom_call.1} parent=5 // pred_region
        %s217 = ssub.s32 %s22, 1
        %s218 = sand.u32 %s53, 1
        %s219 = scalar_lea.sflag [#allocation3], %s218
        %s220 = sand.u32 %s53, 1
        %s221 = smul.addr %s220, 8
        %s222 = scalar_lea.vmem [#allocation2], %s221
        // Predicated region
        $region29: #{tpu_custom_call.1} parent=27 // pred_check
          %p223 = pneg %p66
        $region30: #{tpu_custom_call.1} parent=27 // pred_check_branch
          %225 = sbr.rel (%p223) target = $region32
        $region31: #{tpu_custom_call.1} parent=27 // pred_region
          %226 = dma.done %s219, 128
        $region32: #{tpu_custom_call.1} parent=27 // pred_fallthru
          _
        %s227 = sand.u32 %s85, 1
        %s228 = scalar_lea.sflag [#allocation6], %s227
        %s229 = sand.u32 %s85, 1
        %s230 = smul.addr %s229, 8
        %s231 = scalar_lea.vmem [#allocation5], %s230
        // Predicated region
        $region33: #{tpu_custom_call.1} parent=27 // pred_check
          %p232 = pneg %p98
        $region34: #{tpu_custom_call.1} parent=27 // pred_check_branch
          %234 = sbr.rel (%p232) target = $region36
        $region35: #{tpu_custom_call.1} parent=27 // pred_region
          %235 = dma.done %s228, 128
        $region36: #{tpu_custom_call.1} parent=27 // pred_fallthru
          _
        %s236 = sand.u32 %s53, 1
        %s237 = scalar_lea.sflag [#allocation3], %s236
        %s238 = sand.u32 %s53, 1
        %s239 = smul.addr %s238, 8
        %s240 = scalar_lea.vmem [#allocation2], %s239
        %p241 = pneg %p66
        %p242 = pneg %p63
        %s243 = sand.u32 %s85, 1
        %s244 = scalar_lea.sflag [#allocation6], %s243
        %s245 = sand.u32 %s85, 1
        %s246 = smul.addr %s245, 8
        %s247 = scalar_lea.vmem [#allocation5], %s246
        %p248 = pneg %p98
        %p249 = pneg %p95
        %p250 = pneg %p124
        %p251 = pneg %p121
        %s252 = sand.u32 %s111, 1
        %s253 = scalar_lea.sflag [#allocation4], %s252
        %s254 = sand.u32 %s111, 1
        %s255 = smul.addr %s254, 8
        %s256 = scalar_lea.vmem [#allocation7], %s255
        %p257 = pneg %p150
        %p258 = pneg %p147
        %s259 = sand.u32 %s137, 1
        %s260 = scalar_lea.sflag [#allocation9], %s259
        %s261 = sand.u32 %s137, 1
        %s262 = smul.addr %s261, 8
        %s263 = scalar_lea.vmem [#allocation8], %s262
        %s264 = sadd.s32 %s31, %s32
        %p265 = scmp.lt.s32.totalorder %s264, 1
        %s266 = scalar_select %p265, %s264, 1
        %s267 = sadd.s32 %s31, %s32
        %p268 = scmp.lt.s32.totalorder %s267, 1
        %s269 = scalar_select %p268, %s267, 1
        %p270 = scmp.eq.s32.totalorder %s32, 0
        // Predicated region
        $region37: #{tpu_custom_call.1} parent=27 // pred_check
          %p271 = pneg %p270
        $region38: #{tpu_custom_call.1} parent=27 // pred_check_branch
          %273 = sbr.rel (%p271) target = $region40
        $region39: #{tpu_custom_call.1} parent=27 // pred_region
          %274 = vst [vmem:[%s256] sm:$0xff] 0.0
          %275 = vst [vmem:[%s263] sm:$0xff] 0.0
        $region40: #{tpu_custom_call.1} parent=27 // pred_fallthru
          _
        %v276 = vld [vmem:[%s222] sm:$0xff]
        %v277 = vld [vmem:[%s231] sm:$0xff]
        %v278 = vsub.f32 %v276, %v277
        %v279 = vld [vmem:[%s256] sm:$0xff]
        %v280 = vmul.f32 %v278, %v278
        %v281 = vadd.f32 %v280, 0.0
        %v282 = vadd.f32 %v279, %v281
        %283 = vst [vmem:[%s256] sm:$0xff] %v282
        %v284 = vld [vmem:[%s263] sm:$0xff]
        %v285 = vand.u32 2147483647, %v278
        %v286 = vadd.f32 %v285, 0.0
        %v287 = vadd.f32 %v284, %v286
        %288 = vst [vmem:[%s263] sm:$0xff] %v287
        %s289 = sand.u32 %s111, 1
        %s290 = scalar_lea.sflag [#allocation4], %s289
        %s291 = sand.u32 %s111, 1
        %s292 = smul.addr %s291, 8
        %s293 = scalar_lea.vmem [#allocation7], %s292
        %s294 = sand.u32 %s137, 1
        %s295 = scalar_lea.sflag [#allocation9], %s294
        %s296 = sand.u32 %s137, 1
        %s297 = smul.addr %s296, 8
        %s298 = scalar_lea.vmem [#allocation8], %s297
        // Predicated region
        $region41: #{tpu_custom_call.1} parent=27 // pred_check
          %p299 = pneg %p121
        $region42: #{tpu_custom_call.1} parent=27 // pred_check_branch
          %301 = sbr.rel (%p299) target = $region44
        $region43: #{tpu_custom_call.1} parent=27 // pred_region
          %s303 = ssub.s32 128, 128
          %304 = vsyncadd %s290, %s303
          %s305 = smul.addr %s31, 128
          %s306 = scalar_lea.hbm %s2, %s305
          %s308 = sshll.u32 %s293, 4
          %s309 = int_to_ptr.vmem [resolvable:$true] %s308
          %311 = dma.vmem_to_hbm [thread:$0]  %s309, 128, %s306, %s290
        $region44: #{tpu_custom_call.1} parent=27 // pred_fallthru
          _
        // Predicated region
        $region45: #{tpu_custom_call.1} parent=27 // pred_check
          %p312 = pneg %p147
        $region46: #{tpu_custom_call.1} parent=27 // pred_check_branch
          %314 = sbr.rel (%p312) target = $region48
        $region47: #{tpu_custom_call.1} parent=27 // pred_region
          %s316 = ssub.s32 128, 128
          %317 = vsyncadd %s295, %s316
          %s318 = smul.addr %s31, 128
          %s319 = scalar_lea.hbm %s3, %s318
          %s321 = sshll.u32 %s298, 4
          %s322 = int_to_ptr.vmem [resolvable:$true] %s321
          %324 = dma.vmem_to_hbm [thread:$0]  %s322, 128, %s319, %s295
        $region48: #{tpu_custom_call.1} parent=27 // pred_fallthru
          _
      $region28: #{tpu_custom_call.1} parent=5 // pred_fallthru
        _
      %p325 = scmp.le.s32.totalorder 2, %s22
      // Predicated region
      $region49: #{tpu_custom_call.1} parent=5 // pred_check
        %p326 = pneg %p325
      $region50: #{tpu_custom_call.1} parent=5 // pred_check_branch
        %328 = sbr.rel (%p326) target = $region52
      $region51: #{tpu_custom_call.1} parent=5 // pred_region
        %s329 = ssub.s32 %s22, 2
        // Predicated region
        $region53: #{tpu_custom_call.1} parent=51 // pred_check
          %p330 = pneg %p127
        $region54: #{tpu_custom_call.1} parent=51 // pred_check_branch
          %332 = sbr.rel (%p330) target = $region56
        $region55: #{tpu_custom_call.1} parent=51 // pred_region
          %s333 = sand.u32 %s112, 1
          %s334 = scalar_lea.sflag [#allocation4], %s333
          %s335 = sand.u32 %s112, 1
          %s336 = smul.addr %s335, 8
          %s337 = scalar_lea.vmem [#allocation7], %s336
          %338 = dma.done %s334, 128
        $region56: #{tpu_custom_call.1} parent=51 // pred_fallthru
          _
        // Predicated region
        $region57: #{tpu_custom_call.1} parent=51 // pred_check
          %p339 = pneg %p153
        $region58: #{tpu_custom_call.1} parent=51 // pred_check_branch
          %341 = sbr.rel (%p339) target = $region60
        $region59: #{tpu_custom_call.1} parent=51 // pred_region
          %s342 = sand.u32 %s138, 1
          %s343 = scalar_lea.sflag [#allocation9], %s342
          %s344 = sand.u32 %s138, 1
          %s345 = smul.addr %s344, 8
          %s346 = scalar_lea.vmem [#allocation8], %s345
          %347 = dma.done %s343, 128
        $region60: #{tpu_custom_call.1} parent=51 // pred_fallthru
          _
      $region52: #{tpu_custom_call.1} parent=5 // pred_fallthru
        _
    $region6: #{tpu_custom_call.1} parent=1 // loop_footer
      %s26 = sadd.s32 1, %s22
    $region7: #{tpu_custom_call.1} parent=1 // loop_footer_branch
      %21 = sbr.rel target = $region3
    $region8: #{tpu_custom_call.1} parent=1 // loop_exit
      _
    %348 = vsyncpa [#allocation3], 1
    %s349 = scalar_lea.sflag [#allocation3], 1
    %350 = vsyncpa %s349, 1
    %351 = vsyncpa [#allocation6], 1
    %s352 = scalar_lea.sflag [#allocation6], 1
    %353 = vsyncpa %s352, 1
    %354 = vsyncpa [#allocation4], 1
    %s355 = scalar_lea.sflag [#allocation4], 1
    %356 = vsyncpa %s355, 1
    %357 = vsyncpa [#allocation9], 1
    %s358 = scalar_lea.sflag [#allocation9], 1
    %359 = vsyncpa %s358, 1

</llo_original>
